<compile_context>
chip_gen: v7x
topology: tpu7x:2x2x1
jax: 0.10.0
libtpu: 0.0.40
codegen_flags: <defaults>
</compile_context>

<pallas_src>
import functools

import jax
import jax.numpy as jnp
from jax import lax
from jax.experimental import pallas as pl
from jax.experimental.pallas import tpu as pltpu


def _round_up(n, m):
    return ((n + m - 1) // m) * m


def _ffn_kernel(x_ref, w1_ref, b1_ref, w2_ref, b2_ref, o_ref):
    # x_ref:  (tm, Ep)  f32 activation tile
    # w1_ref: (Hp, Ep)  bf16, PyTorch layout (out_features, in_features)
    # b1_ref: (1,  Hp)  f32
    # w2_ref: (Ep, Hp)  bf16, PyTorch layout
    # b2_ref: (1,  Ep)  f32
    # o_ref:  (tm, Ep)
    x = x_ref[...].astype(jnp.bfloat16)

    # h = x @ W1^T + b1   (contract shared in-feature axis; accumulate in f32)
    h = lax.dot_general(
        x, w1_ref[...],
        dimension_numbers=(((1,), (1,)), ((), ())),
        preferred_element_type=jnp.float32,
    ) + b1_ref[...]

    # y = h @ W2^T + b2
    y = lax.dot_general(
        h.astype(jnp.bfloat16), w2_ref[...],
        dimension_numbers=(((1,), (1,)), ((), ())),
        preferred_element_type=jnp.float32,
    ) + b2_ref[...]

    o_ref[...] = y.astype(o_ref.dtype)


@functools.partial(jax.jit, static_argnames=("tm",))
def position_feed_forward(x, w1, b1, w2, b2, *, tm=None):
    """x: [B, S, E]; w1: [H, E]; b1: [H]; w2: [E, H]; b2: [E] (PyTorch layout)."""
    B, S, E = x.shape
    H = w1.shape[0]
    M = B * S

    # Lane-dense padding (no-op when E/H are already multiples of 128).
    Ep = _round_up(E, 128)
    Hp = _round_up(H, 128)

    x2d = x.reshape(M, E)
    if Ep != E:
        x2d = jnp.pad(x2d, ((0, 0), (0, Ep - E)))
    w1p = jnp.pad(w1, ((0, Hp - H), (0, Ep - E))) if (Ep != E or Hp != H) else w1
    w2p = jnp.pad(w2, ((0, Ep - E), (0, Hp - H))) if (Ep != E or Hp != H) else w2
    b1p = jnp.pad(b1, ((0, Hp - H),)) if Hp != H else b1
    b2p = jnp.pad(b2, ((0, Ep - E),)) if Ep != E else b2

    # bf16 weights: halves DMA bytes and VMEM residency; accumulation stays f32.
    w1b = w1p.astype(jnp.bfloat16)
    w2b = w2p.astype(jnp.bfloat16)
    b1r = b1p.reshape(1, Hp)
    b2r = b2p.reshape(1, Ep)

    if tm is None:
        # Large M tile for MXU utilization; clamp for small problems.
        tm = min(256, _round_up(M, 8))
    grid = (pl.cdiv(M, tm),)

    cost = pl.CostEstimate(
        flops=4 * M * Ep * Hp,  # 2*M*Ep*Hp per matmul, two matmuls
        transcendentals=0,
        bytes_accessed=(2 * M * Ep * 4) + 2 * (Ep * Hp * 2) + (Hp + Ep) * 4,
    )

    out = pl.pallas_call(
        _ffn_kernel,
        out_shape=jax.ShapeDtypeStruct((M, Ep), x.dtype),
        grid_spec=pltpu.PrefetchScalarGridSpec(
            num_scalar_prefetch=0,
            grid=grid,
            in_specs=[
                pl.BlockSpec((tm, Ep), lambda i: (i, 0)),   # x tile
                pl.BlockSpec((Hp, Ep), lambda i: (0, 0)),   # W1 (full, resident)
                pl.BlockSpec((1, Hp), lambda i: (0, 0)),    # b1
                pl.BlockSpec((Ep, Hp), lambda i: (0, 0)),   # W2 (full, resident)
                pl.BlockSpec((1, Ep), lambda i: (0, 0)),    # b2
            ],
            out_specs=pl.BlockSpec((tm, Ep), lambda i: (i, 0)),
        ),
        compiler_params=pltpu.CompilerParams(
            dimension_semantics=("parallel",),
            vmem_limit_bytes=64 * 1024 * 1024,
        ),
        cost_estimate=cost,
    )(x2d, w1b, b1r, w2b, b2r)

    if Ep != E:
        out = out[:, :E]
    return out.reshape(B, S, E)


def _init_linear(key, out_features, in_features, dtype=jnp.float32):
    # Mirror PyTorch nn.Linear default init: U(-1/sqrt(fan_in), 1/sqrt(fan_in)).
    kw, kb = jax.random.split(key)
    bound = 1.0 / (in_features ** 0.5)
    w = jax.random.uniform(kw, (out_features, in_features), dtype,
                           minval=-bound, maxval=bound)
    b = jax.random.uniform(kb, (out_features,), dtype,
                           minval=-bound, maxval=bound)
    return w, b


if __name__ == "__main__":
    key = jax.random.PRNGKey(0)
    k_x, k_l1, k_l2 = jax.random.split(key, 3)

    B, S = 2, 8
    embedding_dim, hidden_sz = 32, 64

    x = jax.random.normal(k_x, (B, S, embedding_dim), jnp.float32)
    w1, b1 = _init_linear(k_l1, hidden_sz, embedding_dim)      # linear1
    w2, b2 = _init_linear(k_l2, embedding_dim, hidden_sz)      # linear2

    out = position_feed_forward(x, w1, b1, w2, b2)
    jax.block_until_ready(out)

    # Pure-JAX f32 reference; kernel uses bf16 inputs with f32 accumulation,
    # so tolerance is loosened accordingly.
    ref = (x @ w1.T + b1) @ w2.T + b2
    assert out.shape == (B, S, embedding_dim)
    assert jnp.allclose(out, ref, atol=5e-2, rtol=5e-2), \
        float(jnp.max(jnp.abs(out - ref)))

    print("KERNEL_OK")
</pallas_src>

<mosaic_0001>
module attributes {stable_mosaic.version = 11 : i64} {
  func.func @_ffn_kernel(%arg0: i32, %arg1: memref<16x128xf32, #tpu.memory_space<vmem>>, %arg2: memref<128x128xbf16, #tpu.memory_space<vmem>>, %arg3: memref<1x128xf32, #tpu.memory_space<vmem>>, %arg4: memref<128x128xbf16, #tpu.memory_space<vmem>>, %arg5: memref<1x128xf32, #tpu.memory_space<vmem>>, %arg6: memref<16x128xf32, #tpu.memory_space<vmem>>) attributes {dimension_semantics = [#tpu.dimension_semantics<parallel>], iteration_bounds = array<i64: 1>, scalar_prefetch = 0 : i64, scratch_operands = 0 : i64, tpu.core_type = #tpu.core_type<tc>, window_params = [{transform_indices = @transform_0, window_bounds = array<i64: 16, 128>}, {pipeline_mode = #tpu.pipeline_mode<synchronous>, transform_indices = @transform_1, window_bounds = array<i64: 128, 128>}, {pipeline_mode = #tpu.pipeline_mode<synchronous>, transform_indices = @transform_2, window_bounds = array<i64: 1, 128>}, {pipeline_mode = #tpu.pipeline_mode<synchronous>, transform_indices = @transform_3, window_bounds = array<i64: 128, 128>}, {pipeline_mode = #tpu.pipeline_mode<synchronous>, transform_indices = @transform_4, window_bounds = array<i64: 1, 128>}, {transform_indices = @transform_5, window_bounds = array<i64: 16, 128>}]} {
    %c0 = arith.constant 0 : index
    %c0_0 = arith.constant 0 : index
    %0 = vector.load %arg1[%c0, %c0_0] : memref<16x128xf32, #tpu.memory_space<vmem>>, vector<16x128xf32>
    %1 = arith.truncf %0 : vector<16x128xf32> to vector<16x128xbf16>
    %c0_1 = arith.constant 0 : index
    %c0_2 = arith.constant 0 : index
    %2 = vector.load %arg2[%c0_1, %c0_2] : memref<128x128xbf16, #tpu.memory_space<vmem>>, vector<128x128xbf16>
    %cst = arith.constant dense<0.000000e+00> : vector<16x128xf32>
    %3 = tpu.matmul %1, %2, %cst {dimension_numbers = #tpu.dot_dimension_numbers<[1], [1], [0], [0], [0, 0, 1, 0], [], []>} : vector<16x128xbf16>, vector<128x128xbf16>, vector<16x128xf32> -> vector<16x128xf32>
    %c0_3 = arith.constant 0 : index
    %c0_4 = arith.constant 0 : index
    %4 = vector.load %arg3[%c0_3, %c0_4] : memref<1x128xf32, #tpu.memory_space<vmem>>, vector<1x128xf32>
    %5 = vector.broadcast %4 : vector<1x128xf32> to vector<16x128xf32>
    %6 = arith.addf %3, %5 : vector<16x128xf32>
    %7 = arith.truncf %6 : vector<16x128xf32> to vector<16x128xbf16>
    %c0_5 = arith.constant 0 : index
    %c0_6 = arith.constant 0 : index
    %8 = vector.load %arg4[%c0_5, %c0_6] : memref<128x128xbf16, #tpu.memory_space<vmem>>, vector<128x128xbf16>
    %cst_7 = arith.constant dense<0.000000e+00> : vector<16x128xf32>
    %9 = tpu.matmul %7, %8, %cst_7 {dimension_numbers = #tpu.dot_dimension_numbers<[1], [1], [0], [0], [0, 0, 1, 0], [], []>} : vector<16x128xbf16>, vector<128x128xbf16>, vector<16x128xf32> -> vector<16x128xf32>
    %c0_8 = arith.constant 0 : index
    %c0_9 = arith.constant 0 : index
    %10 = vector.load %arg5[%c0_8, %c0_9] : memref<1x128xf32, #tpu.memory_space<vmem>>, vector<1x128xf32>
    %11 = vector.broadcast %10 : vector<1x128xf32> to vector<16x128xf32>
    %12 = arith.addf %9, %11 : vector<16x128xf32>
    %c0_10 = arith.constant 0 : index
    %c0_11 = arith.constant 0 : index
    %13 = vector.load %arg6[%c0_10, %c0_11] : memref<16x128xf32, #tpu.memory_space<vmem>>, vector<16x128xf32>
    tpu.vector_store %arg6[%c0_10, %c0_11], %12 {strides = array<i32>} : memref<16x128xf32, #tpu.memory_space<vmem>>, vector<16x128xf32>,
    return
  }
  func.func @transform_0(%arg0: i32) -> (i32, i32) {
    %c0_i32 = arith.constant 0 : i32
    %c0_i32_0 = arith.constant 0 : i32
    return %arg0, %c0_i32 : i32, i32
  }
  func.func @transform_1(%arg0: i32) -> (i32, i32) {
    %c0_i32 = arith.constant 0 : i32
    %c0_i32_0 = arith.constant 0 : i32
    %c0_i32_1 = arith.constant 0 : i32
    return %c0_i32, %c0_i32_0 : i32, i32
  }
  func.func @transform_2(%arg0: i32) -> (i32, i32) {
    %c0_i32 = arith.constant 0 : i32
    %c0_i32_0 = arith.constant 0 : i32
    %c0_i32_1 = arith.constant 0 : i32
    return %c0_i32, %c0_i32_0 : i32, i32
  }
  func.func @transform_3(%arg0: i32) -> (i32, i32) {
    %c0_i32 = arith.constant 0 : i32
    %c0_i32_0 = arith.constant 0 : i32
    %c0_i32_1 = arith.constant 0 : i32
    return %c0_i32, %c0_i32_0 : i32, i32
  }
  func.func @transform_4(%arg0: i32) -> (i32, i32) {
    %c0_i32 = arith.constant 0 : i32
    %c0_i32_0 = arith.constant 0 : i32
    %c0_i32_1 = arith.constant 0 : i32
    return %c0_i32, %c0_i32_0 : i32, i32
  }
  func.func @transform_5(%arg0: i32) -> (i32, i32) {
    %c0_i32 = arith.constant 0 : i32
    %c0_i32_0 = arith.constant 0 : i32
    return %arg0, %c0_i32 : i32, i32
  }
}

</mosaic_0001>

<llo_original>
// kernel: position_feed_forward.1
$region0: #{position_feed_forward.1}
  #allocation0 [shape = 'u32[]', space=smem, size = 0x4, offset = 0x4, fixed_abs, tag = 'smem constant byte address 0x4 - core index']
  #allocation1 [shape = 'u32[144,128]{1,0:T(1,128)}', space=vmem, size = 0x12000, scoped, tag = 'internal scratch']
  %s0 = inlined_call_operand.hbm [shape: f32[16,128], index: 0, kind: input, shape index: {}]
  %s1 = inlined_call_operand.hbm [shape: bf16[128,128], index: 1, kind: input, shape index: {}]
  %s2 = inlined_call_operand.hbm [shape: f32[1,128], index: 2, kind: input, shape index: {}]
  %s3 = inlined_call_operand.hbm [shape: bf16[128,128], index: 3, kind: input, shape index: {}]
  %s4 = inlined_call_operand.hbm [shape: f32[1,128], index: 4, kind: input, shape index: {}]
  %s5 = inlined_call_operand.hbm [shape: f32[16,128], index: 5, kind: output, shape index: {}]
  %s6 = sld [smem:[#allocation0]]
  $region50: #{position_feed_forward.1} parent=0
    _
  %s8 = ssub.s32 1, %s6
  %s9 = scalar_select 0, %s8, %s6
  $region1: #{position_feed_forward.1} parent=0
    #allocation2 [shape = 'u8[8192]{0}', space=vmem, size = 0x2000, scoped, tag = 'input window, operand 0, single buffered']
    #allocation3 [shape = 's32[1]{0}', space=sflag, size = 0x4, scoped, tag = 'scoped memory for position_feed_forward.1']
    #allocation4 [shape = 's32[1]{0}', space=sflag, size = 0x4, scoped, tag = 'scoped memory for position_feed_forward.1']
    #allocation5 [shape = 'u8[32768]{0}', space=vmem, size = 0x8000, scoped, tag = 'input window, operand 1, single buffered']
    #allocation6 [shape = 's32[1]{0}', space=sflag, size = 0x4, scoped, tag = 'scoped memory for position_feed_forward.1']
    #allocation7 [shape = 'u8[512]{0}', space=vmem, size = 0x400, scoped, tag = 'input window, operand 2, single buffered']
    #allocation8 [shape = 'u8[32768]{0}', space=vmem, size = 0x8000, scoped, tag = 'input window, operand 3, single buffered']
    #allocation9 [shape = 's32[1]{0}', space=sflag, size = 0x4, scoped, tag = 'scoped memory for position_feed_forward.1']
    #allocation10 [shape = 'u8[512]{0}', space=vmem, size = 0x400, scoped, tag = 'input window, operand 4, single buffered']
    #allocation11 [shape = 'u8[8192]{0}', space=vmem, size = 0x2000, scoped, tag = 'output window, operand 0, single buffered']
    %10 = vsyncpa [#allocation3], 0
    %11 = vsyncpa [#allocation6], 0
    %12 = vsyncpa [#allocation9], 0
    %13 = vsyncpa [#allocation4], 0
    // Predicated region
    $region2: #{position_feed_forward.1} parent=1 // pred_check
      _
    $region3: #{position_feed_forward.1} parent=1 // pred_check_branch
      %15 = sbr.rel (0) target = $region5
    $region4: #{position_feed_forward.1} parent=1 // pred_region
      %s17 = ssub.s32 256, 256
      %18 = vsyncadd [#allocation3], %s17
      %s19 = sshll.u32 [#allocation2], 4
      %s20 = int_to_ptr.vmem [resolvable:$true] %s19
      %25 = dma.hbm_to_vmem [thread:$0]  %s0, 256, %s20, [#allocation3], 128, 128, 8
    $region5: #{position_feed_forward.1} parent=1 // pred_fallthru
      _
    // Predicated region
    $region6: #{position_feed_forward.1} parent=1 // pred_check
      _
    $region7: #{position_feed_forward.1} parent=1 // pred_check_branch
      %27 = sbr.rel (0) target = $region9
    $region8: #{position_feed_forward.1} parent=1 // pred_region
      %s29 = ssub.s32 1024, 1024
      %30 = vsyncadd [#allocation6], %s29
      %s31 = sshll.u32 [#allocation5], 4
      %s32 = int_to_ptr.vmem [resolvable:$true] %s31
      %37 = dma.hbm_to_vmem [thread:$0]  %s1, 1024, %s32, [#allocation6], 64, 64, 4
    $region9: #{position_feed_forward.1} parent=1 // pred_fallthru
      _
    // Predicated region
    $region10: #{position_feed_forward.1} parent=1 // pred_check
      _
    $region11: #{position_feed_forward.1} parent=1 // pred_check_branch
      %39 = sbr.rel (0) target = $region13
    $region12: #{position_feed_forward.1} parent=1 // pred_region
      %s41 = ssub.s32 16, 16
      %42 = vsyncadd [#allocation6], %s41
      %s44 = sshll.u32 [#allocation7], 4
      %s45 = int_to_ptr.vmem [resolvable:$true] %s44
      %47 = dma.hbm_to_vmem [thread:$0]  %s2, 16, %s45, [#allocation6]
    $region13: #{position_feed_forward.1} parent=1 // pred_fallthru
      _
    // Predicated region
    $region14: #{position_feed_forward.1} parent=1 // pred_check
      _
    $region15: #{position_feed_forward.1} parent=1 // pred_check_branch
      %49 = sbr.rel (0) target = $region17
    $region16: #{position_feed_forward.1} parent=1 // pred_region
      %s51 = ssub.s32 1024, 1024
      %52 = vsyncadd [#allocation9], %s51
      %s53 = sshll.u32 [#allocation8], 4
      %s54 = int_to_ptr.vmem [resolvable:$true] %s53
      %59 = dma.hbm_to_vmem [thread:$0]  %s3, 1024, %s54, [#allocation9], 64, 64, 4
    $region17: #{position_feed_forward.1} parent=1 // pred_fallthru
      _
    // Predicated region
    $region18: #{position_feed_forward.1} parent=1 // pred_check
      _
    $region19: #{position_feed_forward.1} parent=1 // pred_check_branch
      %61 = sbr.rel (0) target = $region21
    $region20: #{position_feed_forward.1} parent=1 // pred_region
      %s63 = ssub.s32 16, 16
      %64 = vsyncadd [#allocation9], %s63
      %s66 = sshll.u32 [#allocation10], 4
      %s67 = int_to_ptr.vmem [resolvable:$true] %s66
      %69 = dma.hbm_to_vmem [thread:$0]  %s4, 16, %s67, [#allocation9]
    $region21: #{position_feed_forward.1} parent=1 // pred_fallthru
      _
    // Predicated region
    $region22: #{position_feed_forward.1} parent=1 // pred_check
      _
    $region23: #{position_feed_forward.1} parent=1 // pred_check_branch
      %71 = sbr.rel (0) target = $region25
    $region24: #{position_feed_forward.1} parent=1 // pred_region
      %72 = dma.done [#allocation3], 256
    $region25: #{position_feed_forward.1} parent=1 // pred_fallthru
      _
    // Predicated region
    $region26: #{position_feed_forward.1} parent=1 // pred_check
      _
    $region27: #{position_feed_forward.1} parent=1 // pred_check_branch
      %74 = sbr.rel (0) target = $region29
    $region28: #{position_feed_forward.1} parent=1 // pred_region
      %75 = dma.done [#allocation6], 1024
    $region29: #{position_feed_forward.1} parent=1 // pred_fallthru
      _
    // Predicated region
    $region30: #{position_feed_forward.1} parent=1 // pred_check
      _
    $region31: #{position_feed_forward.1} parent=1 // pred_check_branch
      %77 = sbr.rel (0) target = $region33
    $region32: #{position_feed_forward.1} parent=1 // pred_region
      %78 = dma.done [#allocation6], 16
    $region33: #{position_feed_forward.1} parent=1 // pred_fallthru
      _
    // Predicated region
    $region34: #{position_feed_forward.1} parent=1 // pred_check
      _
    $region35: #{position_feed_forward.1} parent=1 // pred_check_branch
      %80 = sbr.rel (0) target = $region37
    $region36: #{position_feed_forward.1} parent=1 // pred_region
      %81 = dma.done [#allocation9], 1024
    $region37: #{position_feed_forward.1} parent=1 // pred_fallthru
      _
    // Predicated region
    $region38: #{position_feed_forward.1} parent=1 // pred_check
      _
    $region39: #{position_feed_forward.1} parent=1 // pred_check_branch
      %83 = sbr.rel (0) target = $region41
    $region40: #{position_feed_forward.1} parent=1 // pred_region
      %84 = dma.done [#allocation9], 16
    $region41: #{position_feed_forward.1} parent=1 // pred_fallthru
      _
    %v86 = vld [vmem:[#allocation2] sm:$0xff]
    %v87 = vld [vmem:[#allocation2 + $0x8] sm:$0xff]
    %v88 = vpack.c.bf16 %v87, %v86
    %v89 = vld [vmem:[#allocation5] sm:$0xf]
    %v90 = vld [vmem:[#allocation5 + $0x4] sm:$0xf]
    %v91 = vld [vmem:[#allocation5 + $0x8] sm:$0xf]
    %v92 = vld [vmem:[#allocation5 + $0xc] sm:$0xf]
    %v93 = vld [vmem:[#allocation5 + $0x10] sm:$0xf]
    %v94 = vld [vmem:[#allocation5 + $0x14] sm:$0xf]
    %v95 = vld [vmem:[#allocation5 + $0x18] sm:$0xf]
    %v96 = vld [vmem:[#allocation5 + $0x1c] sm:$0xf]
    %v97 = vld [vmem:[#allocation5 + $0x20] sm:$0xf]
    %v98 = vld [vmem:[#allocation5 + $0x24] sm:$0xf]
    %v99 = vld [vmem:[#allocation5 + $0x28] sm:$0xf]
    %v100 = vld [vmem:[#allocation5 + $0x2c] sm:$0xf]
    %v101 = vld [vmem:[#allocation5 + $0x30] sm:$0xf]
    %v102 = vld [vmem:[#allocation5 + $0x34] sm:$0xf]
    %v103 = vld [vmem:[#allocation5 + $0x38] sm:$0xf]
    %v104 = vld [vmem:[#allocation5 + $0x3c] sm:$0xf]
    %v105 = vld [vmem:[#allocation7] sm:$0x1]
    %v107 = vlaneseq
    %v108 = vshrl.u32 %v107, 7
    %v109 = vsub.s32 0, %v108
    %v110 = vrot.slane %v105, %v109
    %v128 = vunpack.c.l.b16 %v89
    %v129 = vunpack.c.l.b16 %v90
    %v130 = vunpack.c.l.b16 %v91
    %v131 = vunpack.c.l.b16 %v92
    %v132 = vunpack.c.l.b16 %v93
    %v133 = vunpack.c.l.b16 %v94
    %v134 = vunpack.c.l.b16 %v95
    %v135 = vunpack.c.l.b16 %v96
    %v136 = vunpack.c.l.b16 %v97
    %v137 = vunpack.c.l.b16 %v98
    %v138 = vunpack.c.l.b16 %v99
    %v139 = vunpack.c.l.b16 %v100
    %v140 = vunpack.c.l.b16 %v101
    %v141 = vunpack.c.l.b16 %v102
    %v142 = vunpack.c.l.b16 %v103
    %v143 = vunpack.c.l.b16 %v104
    %v144 = vpack.c.b16 %v129, %v128
    %v145 = vpack.c.b16 %v131, %v130
    %v146 = vpack.c.b16 %v133, %v132
    %v147 = vpack.c.b16 %v135, %v134
    %v148 = vpack.c.b16 %v137, %v136
    %v149 = vpack.c.b16 %v139, %v138
    %v150 = vpack.c.b16 %v141, %v140
    %v151 = vpack.c.b16 %v143, %v142
    %160 = vmatprep.subr.bf16.mxu0 0
    %161 = vmatpush1.bf16.xpose.msra.mxu0 %v144
    %162 = vmatprep.subr.bf16.mxu0 0
    %163 = vmatpush1.bf16.xpose.msra.mxu0 %v145
    %164 = vmatprep.subr.bf16.mxu0 0
    %165 = vmatpush1.bf16.xpose.msra.mxu0 %v146
    %166 = vmatprep.subr.bf16.mxu0 0
    %167 = vmatpush1.bf16.xpose.msra.mxu0 %v147
    %168 = vmatprep.subr.bf16.mxu0 0
    %169 = vmatpush1.bf16.xpose.msra.mxu0 %v148
    %170 = vmatprep.subr.bf16.mxu0 0
    %171 = vmatpush1.bf16.xpose.msra.mxu0 %v149
    %172 = vmatprep.subr.bf16.mxu0 0
    %173 = vmatpush1.bf16.xpose.msra.mxu0 %v150
    %174 = vmatprep.subr.bf16.mxu0 0
    %175 = vmatpush1.bf16.xpose.msra.mxu0 %v151
    %176 = vmatprep.subr.bf16.mxu0 0
    %177 = vmatpush1.bf16.xpose.msra.mxu0 0
    %178 = vmatprep.subr.bf16.mxu0 0
    %179 = vmatpush1.bf16.xpose.msra.mxu0 0
    %180 = vmatprep.subr.bf16.mxu0 0
    %181 = vmatpush1.bf16.xpose.msra.mxu0 0
    %182 = vmatprep.subr.bf16.mxu0 0
    %183 = vmatpush1.bf16.xpose.msra.mxu0 0
    %184 = vmatprep.subr.bf16.mxu0 0
    %185 = vmatpush1.bf16.xpose.msra.mxu0 0
    %186 = vmatprep.subr.bf16.mxu0 0
    %187 = vmatpush1.bf16.xpose.msra.mxu0 0
    %188 = vmatprep.subr.bf16.mxu0 0
    %189 = vmatpush1.bf16.xpose.msra.mxu0 0
    %190 = vmatprep.subr.bf16.mxu0 0
    %191 = vmatpush1.bf16.xpose.msra.mxu0 0
    %192 = vmatprep.mubr.bf16.mxu0 0
    %193 = vmatmul.mubr.bf16.gmra.mrb[0].mxu0 %v88
    %v194 = vpop.f32.mrb[0].mxu0
    %v195 = vadd.f32 %v110, %v194
    %v196 = vpop.f32.mrb[0].mxu0
    %v197 = vpop.f32.mrb[0].mxu0
    %v198 = vadd.f32 %v110, %v197
    %v199 = vpop.f32.mrb[0].mxu0
    %200 = vdwg.mxu0
    %v201 = vpack.c.bf16 %v198, %v195
    %v202 = vld [vmem:[#allocation8] sm:$0xf]
    %v203 = vld [vmem:[#allocation8 + $0x4] sm:$0xf]
    %v204 = vld [vmem:[#allocation8 + $0x8] sm:$0xf]
    %v205 = vld [vmem:[#allocation8 + $0xc] sm:$0xf]
    %v206 = vld [vmem:[#allocation8 + $0x10] sm:$0xf]
    %v207 = vld [vmem:[#allocation8 + $0x14] sm:$0xf]
    %v208 = vld [vmem:[#allocation8 + $0x18] sm:$0xf]
    %v209 = vld [vmem:[#allocation8 + $0x1c] sm:$0xf]
    %v210 = vld [vmem:[#allocation8 + $0x20] sm:$0xf]
    %v211 = vld [vmem:[#allocation8 + $0x24] sm:$0xf]
    %v212 = vld [vmem:[#allocation8 + $0x28] sm:$0xf]
    %v213 = vld [vmem:[#allocation8 + $0x2c] sm:$0xf]
    %v214 = vld [vmem:[#allocation8 + $0x30] sm:$0xf]
    %v215 = vld [vmem:[#allocation8 + $0x34] sm:$0xf]
    %v216 = vld [vmem:[#allocation8 + $0x38] sm:$0xf]
    %v217 = vld [vmem:[#allocation8 + $0x3c] sm:$0xf]
    %v218 = vld [vmem:[#allocation10] sm:$0x1]
    %v220 = vlaneseq
    %v221 = vshrl.u32 %v220, 7
    %v222 = vsub.s32 0, %v221
    %v223 = vrot.slane %v218, %v222
    %v241 = vunpack.c.l.b16 %v202
    %v242 = vunpack.c.l.b16 %v203
    %v243 = vunpack.c.l.b16 %v204
    %v244 = vunpack.c.l.b16 %v205
    %v245 = vunpack.c.l.b16 %v206
    %v246 = vunpack.c.l.b16 %v207
    %v247 = vunpack.c.l.b16 %v208
    %v248 = vunpack.c.l.b16 %v209
    %v249 = vunpack.c.l.b16 %v210
    %v250 = vunpack.c.l.b16 %v211
    %v251 = vunpack.c.l.b16 %v212
    %v252 = vunpack.c.l.b16 %v213
    %v253 = vunpack.c.l.b16 %v214
    %v254 = vunpack.c.l.b16 %v215
    %v255 = vunpack.c.l.b16 %v216
    %v256 = vunpack.c.l.b16 %v217
    %v257 = vpack.c.b16 %v242, %v241
    %v258 = vpack.c.b16 %v244, %v243
    %v259 = vpack.c.b16 %v246, %v245
    %v260 = vpack.c.b16 %v248, %v247
    %v261 = vpack.c.b16 %v250, %v249
    %v262 = vpack.c.b16 %v252, %v251
    %v263 = vpack.c.b16 %v254, %v253
    %v264 = vpack.c.b16 %v256, %v255
    %273 = vmatprep.subr.bf16.mxu0 0
    %274 = vmatpush1.bf16.xpose.msra.mxu0 %v257
    %275 = vmatprep.subr.bf16.mxu0 0
    %276 = vmatpush1.bf16.xpose.msra.mxu0 %v258
    %277 = vmatprep.subr.bf16.mxu0 0
    %278 = vmatpush1.bf16.xpose.msra.mxu0 %v259
    %279 = vmatprep.subr.bf16.mxu0 0
    %280 = vmatpush1.bf16.xpose.msra.mxu0 %v260
    %281 = vmatprep.subr.bf16.mxu0 0
    %282 = vmatpush1.bf16.xpose.msra.mxu0 %v261
    %283 = vmatprep.subr.bf16.mxu0 0
    %284 = vmatpush1.bf16.xpose.msra.mxu0 %v262
    %285 = vmatprep.subr.bf16.mxu0 0
    %286 = vmatpush1.bf16.xpose.msra.mxu0 %v263
    %287 = vmatprep.subr.bf16.mxu0 0
    %288 = vmatpush1.bf16.xpose.msra.mxu0 %v264
    %289 = vmatprep.subr.bf16.mxu0 0
    %290 = vmatpush1.bf16.xpose.msra.mxu0 0
    %291 = vmatprep.subr.bf16.mxu0 0
    %292 = vmatpush1.bf16.xpose.msra.mxu0 0
    %293 = vmatprep.subr.bf16.mxu0 0
    %294 = vmatpush1.bf16.xpose.msra.mxu0 0
    %295 = vmatprep.subr.bf16.mxu0 0
    %296 = vmatpush1.bf16.xpose.msra.mxu0 0
    %297 = vmatprep.subr.bf16.mxu0 0
    %298 = vmatpush1.bf16.xpose.msra.mxu0 0
    %299 = vmatprep.subr.bf16.mxu0 0
    %300 = vmatpush1.bf16.xpose.msra.mxu0 0
    %301 = vmatprep.subr.bf16.mxu0 0
    %302 = vmatpush1.bf16.xpose.msra.mxu0 0
    %303 = vmatprep.subr.bf16.mxu0 0
    %304 = vmatpush1.bf16.xpose.msra.mxu0 0
    %305 = vmatprep.mubr.bf16.mxu0 0
    %306 = vmatmul.mubr.bf16.gmra.mrb[0].mxu0 %v201
    %v307 = vpop.f32.mrb[0].mxu0
    %v308 = vadd.f32 %v223, %v307
    %v309 = vpop.f32.mrb[0].mxu0
    %v310 = vpop.f32.mrb[0].mxu0
    %v311 = vadd.f32 %v223, %v310
    %v312 = vpop.f32.mrb[0].mxu0
    %313 = vdwg.mxu0
    %314 = vst [vmem:[#allocation11] sm:$0xff] %v308
    %315 = vst [vmem:[#allocation11 + $0x8] sm:$0xff] %v311
    // Predicated region
    $region42: #{position_feed_forward.1} parent=1 // pred_check
      _
    $region43: #{position_feed_forward.1} parent=1 // pred_check_branch
      %317 = sbr.rel (0) target = $region45
    $region44: #{position_feed_forward.1} parent=1 // pred_region
      %s319 = ssub.s32 256, 256
      %320 = vsyncadd [#allocation4], %s319
      %s321 = sshll.u32 [#allocation11], 4
      %s322 = int_to_ptr.vmem [resolvable:$true] %s321
      %327 = dma.vmem_to_hbm [thread:$0]  %s322, 256, %s5, [#allocation4], 128, 128, 8
    $region45: #{position_feed_forward.1} parent=1 // pred_fallthru
      _
    // Predicated region
    $region46: #{position_feed_forward.1} parent=1 // pred_check
      _
    $region47: #{position_feed_forward.1} parent=1 // pred_check_branch
      %329 = sbr.rel (0) target = $region49
    $region48: #{position_feed_forward.1} parent=1 // pred_region
      %330 = dma.done [#allocation4], 256
    $region49: #{position_feed_forward.1} parent=1 // pred_fallthru
      _
    %331 = vsyncpa [#allocation3], 1
    %332 = vsyncpa [#allocation6], 1
    %333 = vsyncpa [#allocation9], 1
    %334 = vsyncpa [#allocation4], 1

</llo_original>
